<compile_context>
chip_gen: v5e
topology: v5e:2x2
jax: 0.10.0
libtpu: 0.0.40
codegen_flags: <defaults>
</compile_context>

<pallas_src>
import functools

import jax
import jax.numpy as jnp
from jax.experimental import pallas as pl
from jax.experimental.pallas import tpu as pltpu

LANE = 128  # TPU lane width; hidden/output dims padded to a multiple of this.


def _round_up(x, m):
    return ((x + m - 1) // m) * m


def _cdiv(a, b):
    return (a + b - 1) // b


def _mlp_kernel(x_ref, w1_ref, w2_ref, w3_ref, o_ref, *, compute_dtype):
    # Entire hot path (3 matmuls + 2 ReLUs) fused in one kernel invocation.
    # Weights arrive already in `compute_dtype`; only the x tile is cast here
    # (a no-op when x is already stored in compute_dtype upstream).
    x = x_ref[...].astype(compute_dtype)
    h1 = jnp.dot(x, w1_ref[...], preferred_element_type=jnp.float32)
    h1 = jnp.maximum(h1, 0.0).astype(compute_dtype)   # ReLU/compare in fp32 (VPU-safe on v5e)
    h2 = jnp.dot(h1, w2_ref[...], preferred_element_type=jnp.float32)
    h2 = jnp.maximum(h2, 0.0).astype(compute_dtype)
    out = jnp.dot(h2, w3_ref[...], preferred_element_type=jnp.float32)
    o_ref[...] = out.astype(o_ref.dtype)


def prepare_params(w1, w2, w3, *, compute_dtype=jnp.bfloat16):
    """Pad + transpose PyTorch-layout weights to MXU-friendly (in, out) layout.

    Call ONCE at parameter creation / update time (hoisted out of the forward
    path, so no per-call XLA transposes, pads or casts).

    Args:
      w1: (n_hidden, 784)       lin1.weight
      w2: (n_hidden, n_hidden)  lin2.weight
      w3: (n_outputs, n_hidden) fc1.weight
      compute_dtype: weight storage / MXU input dtype (bf16 default; fp32
        accumulation is always used inside the kernel).
    Returns:
      (w1t, w2t, w3t, n_out) with padded shapes
      (784, Hp), (Hp, Hp), (Hp, Op) where Hp/Op are rounded up to 128.
    """
    n_hidden, d_in = w1.shape
    n_out = w3.shape[0]
    h_pad = _round_up(n_hidden, LANE)
    o_pad = _round_up(n_out, LANE)

    # TODO(synk): for the large-n_hidden case on v7x, quantize resident
    # weights to fp8 (fp32 accum) instead of K-tiling; int8 on v6e.
    w1t = jnp.zeros((d_in, h_pad), compute_dtype)
    w1t = w1t.at[:, :n_hidden].set(w1.T.astype(compute_dtype))
    w2t = jnp.zeros((h_pad, h_pad), compute_dtype)
    w2t = w2t.at[:n_hidden, :n_hidden].set(w2.T.astype(compute_dtype))
    w3t = jnp.zeros((h_pad, o_pad), compute_dtype)
    w3t = w3t.at[:n_hidden, :n_out].set(w3.T.astype(compute_dtype))
    return w1t, w2t, w3t, n_out


@functools.partial(
    jax.jit,
    static_argnames=("n_out", "block_b", "compute_dtype", "return_padded"))
def mlp_forward(x, w1t, w2t, w3t, *, n_out, block_b=512,
                compute_dtype=jnp.bfloat16, return_padded=False):
    """Forward pass of MLPNet on pre-prepared (padded, transposed) weights.

    Args:
      x:   (B, 784) input, fp32 or (preferably, for bandwidth) bf16.
      w1t: (784, Hp), w2t: (Hp, Hp), w3t: (Hp, Op) from prepare_params.
      n_out: true (unpadded) number of outputs.
      block_b: batch tile cap.  512 keeps the x-tile in the ~85%+ HBM-roofline
        regime and amortizes the ~0.35 us per-grid-step overhead; large B
        yields a multi-step grid that megacore (v7x) can shard.
      return_padded: if True, return the lane-dense (B, Op) block and let the
        consumer fuse the column slice (avoids an extra HBM round trip).
    Returns:
      (B, n_out) logits in x.dtype (or (B, Op) if return_padded).
    """
    B, d_in = x.shape
    h_pad = w1t.shape[1]
    o_pad = w3t.shape[1]
    out_dtype = x.dtype

    # Batch-tile selection:
    #   * B > block_b: fixed block_b tile (multiple of 16 for bf16 sublanes).
    #   * 64 <= B <= block_b: split into >= 2 steps so ("parallel",) can use
    #     both TensorCores on v7x.
    #   * tiny B: single full-batch tile (full-dim block, no (8,128) issue).
    if B > block_b:
        bb = _round_up(block_b, 16)
    elif B >= 64:
        bb = _round_up(_cdiv(B, 2), 16)
    else:
        bb = B
    grid = (_cdiv(B, bb),)

    itemsize_x = jnp.dtype(x.dtype).itemsize
    itemsize_o = jnp.dtype(out_dtype).itemsize
    w_bytes = (w1t.size * jnp.dtype(w1t.dtype).itemsize
               + w2t.size * jnp.dtype(w2t.dtype).itemsize
               + w3t.size * jnp.dtype(w3t.dtype).itemsize)

    # Explicit VMEM budget: 1x weights (single-buffered) + 2x x-tile +
    # 2x out-tile + headroom for fp32 intermediates/spills.  Cap at 64 MiB so
    # it is valid on v7x (and far above the 16/32 MiB scoped defaults).
    vmem_limit = int(min(
        max(w_bytes + 2 * bb * d_in * itemsize_x
            + 2 * bb * o_pad * itemsize_o + (4 << 20), 16 << 20),
        64 << 20))

    flops = 2 * B * (d_in * h_pad + h_pad * h_pad + h_pad * o_pad)
    bytes_accessed = (x.size * itemsize_x + w_bytes + B * o_pad * itemsize_o)

    out_padded = pl.pallas_call(
        functools.partial(_mlp_kernel, compute_dtype=compute_dtype),
        out_shape=jax.ShapeDtypeStruct((B, o_pad), out_dtype),
        grid_spec=pltpu.PrefetchScalarGridSpec(
            num_scalar_prefetch=0,
            grid=grid,
            in_specs=[
                # x tiled over batch (double-buffered by default).
                # TODO(synk): sweep pipeline_mode=pl.Buffered(3) here if
                # profiling shows DMA start latency exposed at step edges.
                pl.BlockSpec((bb, d_in), lambda i: (i, 0)),
                # Constant-index weights: resident in VMEM, single-buffered
                # (no re-fetch ever happens; default double-buffering would
                # just double weight VMEM).
                pl.BlockSpec((d_in, h_pad), lambda i: (0, 0),
                             pipeline_mode=pl.Buffered(1)),
                pl.BlockSpec((h_pad, h_pad), lambda i: (0, 0),
                             pipeline_mode=pl.Buffered(1)),
                pl.BlockSpec((h_pad, o_pad), lambda i: (0, 0),
                             pipeline_mode=pl.Buffered(1)),
            ],
            # Lane-dense output (Op is a multiple of 128) -> unmasked stores.
            out_specs=pl.BlockSpec((bb, o_pad), lambda i: (i, 0)),
        ),
        compiler_params=pltpu.CompilerParams(
            dimension_semantics=("parallel",),
            vmem_limit_bytes=vmem_limit,
        ),
        cost_estimate=pl.CostEstimate(
            flops=flops, transcendentals=0, bytes_accessed=bytes_accessed),
    )(x, w1t, w2t, w3t)

    if return_padded:
        return out_padded
    # Slice off the zero-padded output columns (consumer can fuse this away
    # by passing return_padded=True).
    return out_padded[:, :n_out]


def reference_forward(x, w1, w2, w3):
    h = jnp.maximum(x @ w1.T, 0.0)
    h = jnp.maximum(h @ w2.T, 0.0)
    return h @ w3.T


if __name__ == "__main__":
    # TODO(synk): the PyTorch module also stashes activations in self.act
    # (OrderedDict side effect); only the functional forward is implemented.
    n_hidden = 100
    n_outputs = 10
    batch = 8

    key = jax.random.PRNGKey(0)
    kx, k1, k2, k3 = jax.random.split(key, 4)

    # nn.Linear(in, out, bias=False) stores weight as (out, in).
    x = jax.random.normal(kx, (batch, 784), dtype=jnp.float32)
    w1 = jax.random.normal(k1, (n_hidden, 784), dtype=jnp.float32) * 0.05
    w2 = jax.random.normal(k2, (n_hidden, n_hidden), dtype=jnp.float32) * 0.05
    w3 = jax.random.normal(k3, (n_outputs, n_hidden), dtype=jnp.float32) * 0.05

    ref = reference_forward(x, w1, w2, w3)

    # fp32 path: exact match vs reference.
    w1f, w2f, w3f, n_out = prepare_params(w1, w2, w3,
                                          compute_dtype=jnp.float32)
    out_f32 = mlp_forward(x, w1f, w2f, w3f, n_out=n_out,
                          compute_dtype=jnp.float32)
    out_f32 = jax.block_until_ready(out_f32)
    assert out_f32.shape == (batch, n_outputs), out_f32.shape
    assert jnp.allclose(out_f32, ref, atol=1e-4, rtol=1e-4), (
        float(jnp.max(jnp.abs(out_f32 - ref))))

    # Default bf16 path: bf16 weights AND bf16 x stored upstream (halves the
    # dominant x HBM stream); fp32 MXU accumulation preserves accuracy.
    w1b, w2b, w3b, _ = prepare_params(w1, w2, w3)      # bf16 default
    x_bf16 = x.astype(jnp.bfloat16)                    # stored once upstream
    out_bf16 = mlp_forward(x_bf16, w1b, w2b, w3b, n_out=n_out)
    out_bf16 = jax.block_until_ready(out_bf16)
    assert out_bf16.shape == (batch, n_outputs), out_bf16.shape
    assert jnp.allclose(out_bf16.astype(jnp.float32), ref,
                        atol=1e-1, rtol=1e-1), (
        float(jnp.max(jnp.abs(out_bf16.astype(jnp.float32) - ref))))

    print("KERNEL_OK")
</pallas_src>

<mosaic_0001>
module attributes {stable_mosaic.version = 11 : i64} {
  func.func @_mlp_kernel(%arg0: i32, %arg1: memref<8x784xf32, #tpu.memory_space<vmem>>, %arg2: memref<784x128xf32, #tpu.memory_space<vmem>>, %arg3: memref<128x128xf32, #tpu.memory_space<vmem>>, %arg4: memref<128x128xf32, #tpu.memory_space<vmem>>, %arg5: memref<8x128xf32, #tpu.memory_space<vmem>>) attributes {dimension_semantics = [#tpu.dimension_semantics<parallel>], iteration_bounds = array<i64: 1>, scalar_prefetch = 0 : i64, scratch_operands = 0 : i64, tpu.core_type = #tpu.core_type<tc>, window_params = [{transform_indices = @transform_0, window_bounds = array<i64: 8, 784>}, {pipeline_mode = #tpu.pipeline_mode<synchronous>, transform_indices = @transform_1, window_bounds = array<i64: 784, 128>}, {pipeline_mode = #tpu.pipeline_mode<synchronous>, transform_indices = @transform_2, window_bounds = array<i64: 128, 128>}, {pipeline_mode = #tpu.pipeline_mode<synchronous>, transform_indices = @transform_3, window_bounds = array<i64: 128, 128>}, {transform_indices = @transform_4, window_bounds = array<i64: 8, 128>}]} {
    %c0 = arith.constant 0 : index
    %c0_0 = arith.constant 0 : index
    %0 = vector.load %arg1[%c0, %c0_0] : memref<8x784xf32, #tpu.memory_space<vmem>>, vector<8x784xf32>
    %c0_1 = arith.constant 0 : index
    %c0_2 = arith.constant 0 : index
    %1 = vector.load %arg2[%c0_1, %c0_2] : memref<784x128xf32, #tpu.memory_space<vmem>>, vector<784x128xf32>
    %cst = arith.constant dense<0.000000e+00> : vector<8x128xf32>
    %2 = tpu.matmul %0, %1, %cst {dimension_numbers = #tpu.dot_dimension_numbers<[1], [0], [0], [1], [0, 0, 1, 1], [], []>} : vector<8x784xf32>, vector<784x128xf32>, vector<8x128xf32> -> vector<8x128xf32>
    %cst_3 = arith.constant 0.000000e+00 : f32
    %3 = vector.broadcast %cst_3 : f32 to vector<8x128xf32>
    %4 = arith.maximumf %2, %3 : vector<8x128xf32>
    %c0_4 = arith.constant 0 : index
    %c0_5 = arith.constant 0 : index
    %5 = vector.load %arg3[%c0_4, %c0_5] : memref<128x128xf32, #tpu.memory_space<vmem>>, vector<128x128xf32>
    %cst_6 = arith.constant dense<0.000000e+00> : vector<8x128xf32>
    %6 = tpu.matmul %4, %5, %cst_6 {dimension_numbers = #tpu.dot_dimension_numbers<[1], [0], [0], [1], [0, 0, 1, 1], [], []>} : vector<8x128xf32>, vector<128x128xf32>, vector<8x128xf32> -> vector<8x128xf32>
    %cst_7 = arith.constant 0.000000e+00 : f32
    %7 = vector.broadcast %cst_7 : f32 to vector<8x128xf32>
    %8 = arith.maximumf %6, %7 : vector<8x128xf32>
    %c0_8 = arith.constant 0 : index
    %c0_9 = arith.constant 0 : index
    %9 = vector.load %arg4[%c0_8, %c0_9] : memref<128x128xf32, #tpu.memory_space<vmem>>, vector<128x128xf32>
    %cst_10 = arith.constant dense<0.000000e+00> : vector<8x128xf32>
    %10 = tpu.matmul %8, %9, %cst_10 {dimension_numbers = #tpu.dot_dimension_numbers<[1], [0], [0], [1], [0, 0, 1, 1], [], []>} : vector<8x128xf32>, vector<128x128xf32>, vector<8x128xf32> -> vector<8x128xf32>
    %c0_11 = arith.constant 0 : index
    %c0_12 = arith.constant 0 : index
    %11 = vector.load %arg5[%c0_11, %c0_12] : memref<8x128xf32, #tpu.memory_space<vmem>>, vector<8x128xf32>
    tpu.vector_store %arg5[%c0_11, %c0_12], %10 {strides = array<i32>} : memref<8x128xf32, #tpu.memory_space<vmem>>, vector<8x128xf32>,
    return
  }
  func.func @transform_0(%arg0: i32) -> (i32, i32) {
    %c0_i32 = arith.constant 0 : i32
    %c0_i32_0 = arith.constant 0 : i32
    return %arg0, %c0_i32 : i32, i32
  }
  func.func @transform_1(%arg0: i32) -> (i32, i32) {
    %c0_i32 = arith.constant 0 : i32
    %c0_i32_0 = arith.constant 0 : i32
    %c0_i32_1 = arith.constant 0 : i32
    return %c0_i32, %c0_i32_0 : i32, i32
  }
  func.func @transform_2(%arg0: i32) -> (i32, i32) {
    %c0_i32 = arith.constant 0 : i32
    %c0_i32_0 = arith.constant 0 : i32
    %c0_i32_1 = arith.constant 0 : i32
    return %c0_i32, %c0_i32_0 : i32, i32
  }
  func.func @transform_3(%arg0: i32) -> (i32, i32) {
    %c0_i32 = arith.constant 0 : i32
    %c0_i32_0 = arith.constant 0 : i32
    %c0_i32_1 = arith.constant 0 : i32
    return %c0_i32, %c0_i32_0 : i32, i32
  }
  func.func @transform_4(%arg0: i32) -> (i32, i32) {
    %c0_i32 = arith.constant 0 : i32
    %c0_i32_0 = arith.constant 0 : i32
    return %arg0, %c0_i32 : i32, i32
  }
}

</mosaic_0001>

<llo_original>
// kernel: mlp_forward.1
$region0: #{mlp_forward.1}
  #allocation0 [shape = 'u32[]', space=smem, size = 0x4, offset = 0x4, fixed_abs, tag = 'smem constant byte address 0x4 - core index']
  #allocation1 [shape = 'u32[72,128]{1,0:T(1,128)}', space=vmem, size = 0x9000, scoped, tag = 'internal scratch']
  %s0 = inlined_call_operand.hbm [shape: f32[8,784], index: 0, kind: input, shape index: {}]
  %s1 = inlined_call_operand.hbm [shape: f32[784,128], index: 1, kind: input, shape index: {}]
  %s2 = inlined_call_operand.hbm [shape: f32[128,128], index: 2, kind: input, shape index: {}]
  %s3 = inlined_call_operand.hbm [shape: f32[128,128], index: 3, kind: input, shape index: {}]
  %s4 = inlined_call_operand.hbm [shape: f32[8,128], index: 4, kind: output, shape index: {}]
  %s5 = sld [smem:[#allocation0]]
  $region42: #{mlp_forward.1} parent=0
    _
  %s7 = ssub.s32 1, %s5
  %s8 = scalar_select 0, %s7, %s5
  $region1: #{mlp_forward.1} parent=0
    #allocation2 [shape = 'u8[28672]{0}', space=vmem, size = 0x7000, scoped, tag = 'input window, operand 0, single buffered']
    #allocation3 [shape = 's32[1]{0}', space=sflag, size = 0x4, scoped, tag = 'scoped memory for mlp_forward.1']
    #allocation4 [shape = 's32[1]{0}', space=sflag, size = 0x4, scoped, tag = 'scoped memory for mlp_forward.1']
    #allocation5 [shape = 'u8[401408]{0}', space=vmem, size = 0x62000, scoped, tag = 'input window, operand 1, single buffered']
    #allocation6 [shape = 's32[1]{0}', space=sflag, size = 0x4, scoped, tag = 'scoped memory for mlp_forward.1']
    #allocation7 [shape = 'u8[65536]{0}', space=vmem, size = 0x10000, scoped, tag = 'input window, operand 2, single buffered']
    #allocation8 [shape = 'u8[65536]{0}', space=vmem, size = 0x10000, scoped, tag = 'input window, operand 3, single buffered']
    #allocation9 [shape = 's32[1]{0}', space=sflag, size = 0x4, scoped, tag = 'scoped memory for mlp_forward.1']
    #allocation10 [shape = 'u8[4096]{0}', space=vmem, size = 0x1000, scoped, tag = 'output window, operand 0, single buffered']
    %9 = vsyncpa [#allocation3], 0
    %10 = vsyncpa [#allocation6], 0
    %11 = vsyncpa [#allocation9], 0
    %12 = vsyncpa [#allocation4], 0
    // Predicated region
    $region2: #{mlp_forward.1} parent=1 // pred_check
      _
    $region3: #{mlp_forward.1} parent=1 // pred_check_branch
      %14 = sbr.rel (0) target = $region5
    $region4: #{mlp_forward.1} parent=1 // pred_region
      %16 = vsyncadd [#allocation3], 0
      %s18 = sshll.u32 %s0, 4
      %s19 = int_to_ptr.hbm [resolvable:$true] %s18
      %s20 = sshll.u32 [#allocation2], 4
      %s21 = int_to_ptr.vmem [resolvable:$true] %s20
      %23 = dma.hbm_to_vmem [thread:$0]  %s19, 896, %s21, [#allocation3]
    $region5: #{mlp_forward.1} parent=1 // pred_fallthru
      _
    // Predicated region
    $region6: #{mlp_forward.1} parent=1 // pred_check
      _
    $region7: #{mlp_forward.1} parent=1 // pred_check_branch
      %25 = sbr.rel (0) target = $region9
    $region8: #{mlp_forward.1} parent=1 // pred_region
      %27 = vsyncadd [#allocation6], 0
      %s28 = sshll.u32 %s1, 4
      %s29 = int_to_ptr.hbm [resolvable:$true] %s28
      %s30 = sshll.u32 [#allocation5], 4
      %s31 = int_to_ptr.vmem [resolvable:$true] %s30
      %36 = dma.hbm_to_vmem [thread:$0]  %s29, 12544, %s31, [#allocation6], 128, 128, 8
    $region9: #{mlp_forward.1} parent=1 // pred_fallthru
      _
    // Predicated region
    $region10: #{mlp_forward.1} parent=1 // pred_check
      _
    $region11: #{mlp_forward.1} parent=1 // pred_check_branch
      %38 = sbr.rel (0) target = $region13
    $region12: #{mlp_forward.1} parent=1 // pred_region
      %40 = vsyncadd [#allocation6], 0
      %s41 = sshll.u32 %s2, 4
      %s42 = int_to_ptr.hbm [resolvable:$true] %s41
      %s43 = sshll.u32 [#allocation7], 4
      %s44 = int_to_ptr.vmem [resolvable:$true] %s43
      %49 = dma.hbm_to_vmem [thread:$0]  %s42, 2048, %s44, [#allocation6], 128, 128, 8
    $region13: #{mlp_forward.1} parent=1 // pred_fallthru
      _
    // Predicated region
    $region14: #{mlp_forward.1} parent=1 // pred_check
      _
    $region15: #{mlp_forward.1} parent=1 // pred_check_branch
      %51 = sbr.rel (0) target = $region17
    $region16: #{mlp_forward.1} parent=1 // pred_region
      %53 = vsyncadd [#allocation9], 0
      %s54 = sshll.u32 %s3, 4
      %s55 = int_to_ptr.hbm [resolvable:$true] %s54
      %s56 = sshll.u32 [#allocation8], 4
      %s57 = int_to_ptr.vmem [resolvable:$true] %s56
      %62 = dma.hbm_to_vmem [thread:$0]  %s55, 2048, %s57, [#allocation9], 128, 128, 8
    $region17: #{mlp_forward.1} parent=1 // pred_fallthru
      _
    // Predicated region
    $region18: #{mlp_forward.1} parent=1 // pred_check
      _
    $region19: #{mlp_forward.1} parent=1 // pred_check_branch
      %64 = sbr.rel (0) target = $region21
    $region20: #{mlp_forward.1} parent=1 // pred_region
      %66 = dma.done [#allocation3], 896
    $region21: #{mlp_forward.1} parent=1 // pred_fallthru
      _
    // Predicated region
    $region22: #{mlp_forward.1} parent=1 // pred_check
      _
    $region23: #{mlp_forward.1} parent=1 // pred_check_branch
      %68 = sbr.rel (0) target = $region25
    $region24: #{mlp_forward.1} parent=1 // pred_region
      %70 = dma.done [#allocation6], 12544
    $region25: #{mlp_forward.1} parent=1 // pred_fallthru
      _
    // Predicated region
    $region26: #{mlp_forward.1} parent=1 // pred_check
      _
    $region27: #{mlp_forward.1} parent=1 // pred_check_branch
      %72 = sbr.rel (0) target = $region29
    $region28: #{mlp_forward.1} parent=1 // pred_region
      %74 = dma.done [#allocation6], 2048
    $region29: #{mlp_forward.1} parent=1 // pred_fallthru
      _
    // Predicated region
    $region30: #{mlp_forward.1} parent=1 // pred_check
      _
    $region31: #{mlp_forward.1} parent=1 // pred_check_branch
      %76 = sbr.rel (0) target = $region33
    $region32: #{mlp_forward.1} parent=1 // pred_region
      %78 = dma.done [#allocation9], 2048
    $region33: #{mlp_forward.1} parent=1 // pred_fallthru
      _
    %v79 = vld [vmem:[#allocation2] sm:$0xff]
    %v80 = vld [vmem:[#allocation2 + $0x8] sm:$0xff]
    %v81 = vld [vmem:[#allocation2 + $0x10] sm:$0xff]
    %v82 = vld [vmem:[#allocation2 + $0x18] sm:$0xff]
    %v83 = vld [vmem:[#allocation2 + $0x20] sm:$0xff]
    %v84 = vld [vmem:[#allocation2 + $0x28] sm:$0xff]
    %v85 = vld [vmem:[#allocation2 + $0x30] sm:$0xff]
    %v86 = vld [vmem:[#allocation5] sm:$0xff]
    %v87 = vld [vmem:[#allocation5 + $0x8] sm:$0xff]
    %v88 = vld [vmem:[#allocation5 + $0x10] sm:$0xff]
    %v89 = vld [vmem:[#allocation5 + $0x18] sm:$0xff]
    %v90 = vld [vmem:[#allocation5 + $0x20] sm:$0xff]
    %v91 = vld [vmem:[#allocation5 + $0x28] sm:$0xff]
    %v92 = vld [vmem:[#allocation5 + $0x30] sm:$0xff]
    %v93 = vld [vmem:[#allocation5 + $0x38] sm:$0xff]
    %v94 = vld [vmem:[#allocation5 + $0x40] sm:$0xff]
    %v95 = vld [vmem:[#allocation5 + $0x48] sm:$0xff]
    %v96 = vld [vmem:[#allocation5 + $0x50] sm:$0xff]
    %v97 = vld [vmem:[#allocation5 + $0x58] sm:$0xff]
    %v98 = vld [vmem:[#allocation5 + $0x60] sm:$0xff]
    %v99 = vld [vmem:[#allocation5 + $0x68] sm:$0xff]
    %v100 = vld [vmem:[#allocation5 + $0x70] sm:$0xff]
    %v101 = vld [vmem:[#allocation5 + $0x78] sm:$0xff]
    %v102 = vld [vmem:[#allocation5 + $0x80] sm:$0xff]
    %v103 = vld [vmem:[#allocation5 + $0x88] sm:$0xff]
    %v104 = vld [vmem:[#allocation5 + $0x90] sm:$0xff]
    %v105 = vld [vmem:[#allocation5 + $0x98] sm:$0xff]
    %v106 = vld [vmem:[#allocation5 + $0xa0] sm:$0xff]
    %v107 = vld [vmem:[#allocation5 + $0xa8] sm:$0xff]
    %v108 = vld [vmem:[#allocation5 + $0xb0] sm:$0xff]
    %v109 = vld [vmem:[#allocation5 + $0xb8] sm:$0xff]
    %v110 = vld [vmem:[#allocation5 + $0xc0] sm:$0xff]
    %v111 = vld [vmem:[#allocation5 + $0xc8] sm:$0xff]
    %v112 = vld [vmem:[#allocation5 + $0xd0] sm:$0xff]
    %v113 = vld [vmem:[#allocation5 + $0xd8] sm:$0xff]
    %v114 = vld [vmem:[#allocation5 + $0xe0] sm:$0xff]
    %v115 = vld [vmem:[#allocation5 + $0xe8] sm:$0xff]
    %v116 = vld [vmem:[#allocation5 + $0xf0] sm:$0xff]
    %v117 = vld [vmem:[#allocation5 + $0xf8] sm:$0xff]
    %v118 = vld [vmem:[#allocation5 + $0x100] sm:$0xff]
    %v119 = vld [vmem:[#allocation5 + $0x108] sm:$0xff]
    %v120 = vld [vmem:[#allocation5 + $0x110] sm:$0xff]
    %v121 = vld [vmem:[#allocation5 + $0x118] sm:$0xff]
    %v122 = vld [vmem:[#allocation5 + $0x120] sm:$0xff]
    %v123 = vld [vmem:[#allocation5 + $0x128] sm:$0xff]
    %v124 = vld [vmem:[#allocation5 + $0x130] sm:$0xff]
    %v125 = vld [vmem:[#allocation5 + $0x138] sm:$0xff]
    %v126 = vld [vmem:[#allocation5 + $0x140] sm:$0xff]
    %v127 = vld [vmem:[#allocation5 + $0x148] sm:$0xff]
    %v128 = vld [vmem:[#allocation5 + $0x150] sm:$0xff]
    %v129 = vld [vmem:[#allocation5 + $0x158] sm:$0xff]
    %v130 = vld [vmem:[#allocation5 + $0x160] sm:$0xff]
    %v131 = vld [vmem:[#allocation5 + $0x168] sm:$0xff]
    %v132 = vld [vmem:[#allocation5 + $0x170] sm:$0xff]
    %v133 = vld [vmem:[#allocation5 + $0x178] sm:$0xff]
    %v134 = vld [vmem:[#allocation5 + $0x180] sm:$0xff]
    %v135 = vld [vmem:[#allocation5 + $0x188] sm:$0xff]
    %v136 = vld [vmem:[#allocation5 + $0x190] sm:$0xff]
    %v137 = vld [vmem:[#allocation5 + $0x198] sm:$0xff]
    %v138 = vld [vmem:[#allocation5 + $0x1a0] sm:$0xff]
    %v139 = vld [vmem:[#allocation5 + $0x1a8] sm:$0xff]
    %v140 = vld [vmem:[#allocation5 + $0x1b0] sm:$0xff]
    %v141 = vld [vmem:[#allocation5 + $0x1b8] sm:$0xff]
    %v142 = vld [vmem:[#allocation5 + $0x1c0] sm:$0xff]
    %v143 = vld [vmem:[#allocation5 + $0x1c8] sm:$0xff]
    %v144 = vld [vmem:[#allocation5 + $0x1d0] sm:$0xff]
    %v145 = vld [vmem:[#allocation5 + $0x1d8] sm:$0xff]
    %v146 = vld [vmem:[#allocation5 + $0x1e0] sm:$0xff]
    %v147 = vld [vmem:[#allocation5 + $0x1e8] sm:$0xff]
    %v148 = vld [vmem:[#allocation5 + $0x1f0] sm:$0xff]
    %v149 = vld [vmem:[#allocation5 + $0x1f8] sm:$0xff]
    %v150 = vld [vmem:[#allocation5 + $0x200] sm:$0xff]
    %v151 = vld [vmem:[#allocation5 + $0x208] sm:$0xff]
    %v152 = vld [vmem:[#allocation5 + $0x210] sm:$0xff]
    %v153 = vld [vmem:[#allocation5 + $0x218] sm:$0xff]
    %v154 = vld [vmem:[#allocation5 + $0x220] sm:$0xff]
    %v155 = vld [vmem:[#allocation5 + $0x228] sm:$0xff]
    %v156 = vld [vmem:[#allocation5 + $0x230] sm:$0xff]
    %v157 = vld [vmem:[#allocation5 + $0x238] sm:$0xff]
    %v158 = vld [vmem:[#allocation5 + $0x240] sm:$0xff]
    %v159 = vld [vmem:[#allocation5 + $0x248] sm:$0xff]
    %v160 = vld [vmem:[#allocation5 + $0x250] sm:$0xff]
    %v161 = vld [vmem:[#allocation5 + $0x258] sm:$0xff]
    %v162 = vld [vmem:[#allocation5 + $0x260] sm:$0xff]
    %v163 = vld [vmem:[#allocation5 + $0x268] sm:$0xff]
    %v164 = vld [vmem:[#allocation5 + $0x270] sm:$0xff]
    %v165 = vld [vmem:[#allocation5 + $0x278] sm:$0xff]
    %v166 = vld [vmem:[#allocation5 + $0x280] sm:$0xff]
    %v167 = vld [vmem:[#allocation5 + $0x288] sm:$0xff]
    %v168 = vld [vmem:[#allocation5 + $0x290] sm:$0xff]
    %v169 = vld [vmem:[#allocation5 + $0x298] sm:$0xff]
    %v170 = vld [vmem:[#allocation5 + $0x2a0] sm:$0xff]
    %v171 = vld [vmem:[#allocation5 + $0x2a8] sm:$0xff]
    %v172 = vld [vmem:[#allocation5 + $0x2b0] sm:$0xff]
    %v173 = vld [vmem:[#allocation5 + $0x2b8] sm:$0xff]
    %v174 = vld [vmem:[#allocation5 + $0x2c0] sm:$0xff]
    %v175 = vld [vmem:[#allocation5 + $0x2c8] sm:$0xff]
    %v176 = vld [vmem:[#allocation5 + $0x2d0] sm:$0xff]
    %v177 = vld [vmem:[#allocation5 + $0x2d8] sm:$0xff]
    %v178 = vld [vmem:[#allocation5 + $0x2e0] sm:$0xff]
    %v179 = vld [vmem:[#allocation5 + $0x2e8] sm:$0xff]
    %v180 = vld [vmem:[#allocation5 + $0x2f0] sm:$0xff]
    %v181 = vld [vmem:[#allocation5 + $0x2f8] sm:$0xff]
    %v182 = vld [vmem:[#allocation5 + $0x300] sm:$0xff]
    %v183 = vld [vmem:[#allocation5 + $0x308] sm:$0xff]
    %vm184 = vcmask 130048
    %v186 = vsel %vm184, %v85, 0
    %188 = vmatpush.msra.mxu0 %v101
    %189 = vmatpush.msra.mxu0 %v100
    %190 = vmatpush.msra.mxu0 %v99
    %191 = vmatpush.msra.mxu0 %v98
    %192 = vmatpush.msra.mxu0 %v97
    %193 = vmatpush.msra.mxu0 %v96
    %194 = vmatpush.msra.mxu0 %v95
    %195 = vmatpush.msra.mxu0 %v94
    %196 = vmatpush.msra.mxu0 %v93
    %197 = vmatpush.msra.mxu0 %v92
    %198 = vmatpush.msra.mxu0 %v91
    %199 = vmatpush.msra.mxu0 %v90
    %200 = vmatpush.msra.mxu0 %v89
    %201 = vmatpush.msra.mxu0 %v88
    %202 = vmatpush.msra.mxu0 %v87
    %203 = vmatpush.msra.mxu0 %v86
    %204 = vmatmul.f32.gmra.mxu0 %v79
    %v205 = vpop.f32.mrf.mxu0
    %v206 = vadd.f32 0.0, %v205
    %207 = vdwg.mxu0
    %208 = vmatpush.msra.mxu0 %v117
    %209 = vmatpush.msra.mxu0 %v116
    %210 = vmatpush.msra.mxu0 %v115
    %211 = vmatpush.msra.mxu0 %v114
    %212 = vmatpush.msra.mxu0 %v113
    %213 = vmatpush.msra.mxu0 %v112
    %214 = vmatpush.msra.mxu0 %v111
    %215 = vmatpush.msra.mxu0 %v110
    %216 = vmatpush.msra.mxu0 %v109
    %217 = vmatpush.msra.mxu0 %v108
    %218 = vmatpush.msra.mxu0 %v107
    %219 = vmatpush.msra.mxu0 %v106
    %220 = vmatpush.msra.mxu0 %v105
    %221 = vmatpush.msra.mxu0 %v104
    %222 = vmatpush.msra.mxu0 %v103
    %223 = vmatpush.msra.mxu0 %v102
    %224 = vmatmul.f32.gmra.mxu0 %v80
    %v225 = vpop.f32.mrf.mxu0
    %v226 = vadd.f32 %v206, %v225
    %227 = vdwg.mxu0
    %228 = vmatpush.msra.mxu0 %v133
    %229 = vmatpush.msra.mxu0 %v132
    %230 = vmatpush.msra.mxu0 %v131
    %231 = vmatpush.msra.mxu0 %v130
    %232 = vmatpush.msra.mxu0 %v129
    %233 = vmatpush.msra.mxu0 %v128
    %234 = vmatpush.msra.mxu0 %v127
    %235 = vmatpush.msra.mxu0 %v126
    %236 = vmatpush.msra.mxu0 %v125
    %237 = vmatpush.msra.mxu0 %v124
    %238 = vmatpush.msra.mxu0 %v123
    %239 = vmatpush.msra.mxu0 %v122
    %240 = vmatpush.msra.mxu0 %v121
    %241 = vmatpush.msra.mxu0 %v120
    %242 = vmatpush.msra.mxu0 %v119
    %243 = vmatpush.msra.mxu0 %v118
    %244 = vmatmul.f32.gmra.mxu0 %v81
    %v245 = vpop.f32.mrf.mxu0
    %v246 = vadd.f32 %v226, %v245
    %247 = vdwg.mxu0
    %248 = vmatpush.msra.mxu0 %v149
    %249 = vmatpush.msra.mxu0 %v148
    %250 = vmatpush.msra.mxu0 %v147
    %251 = vmatpush.msra.mxu0 %v146
    %252 = vmatpush.msra.mxu0 %v145
    %253 = vmatpush.msra.mxu0 %v144
    %254 = vmatpush.msra.mxu0 %v143
    %255 = vmatpush.msra.mxu0 %v142
    %256 = vmatpush.msra.mxu0 %v141
    %257 = vmatpush.msra.mxu0 %v140
    %258 = vmatpush.msra.mxu0 %v139
    %259 = vmatpush.msra.mxu0 %v138
    %260 = vmatpush.msra.mxu0 %v137
    %261 = vmatpush.msra.mxu0 %v136
    %262 = vmatpush.msra.mxu0 %v135
    %263 = vmatpush.msra.mxu0 %v134
    %264 = vmatmul.f32.gmra.mxu0 %v82
    %v265 = vpop.f32.mrf.mxu0
    %v266 = vadd.f32 %v246, %v265
    %267 = vdwg.mxu0
    %268 = vmatpush.msra.mxu0 %v165
    %269 = vmatpush.msra.mxu0 %v164
    %270 = vmatpush.msra.mxu0 %v163
    %271 = vmatpush.msra.mxu0 %v162
    %272 = vmatpush.msra.mxu0 %v161
    %273 = vmatpush.msra.mxu0 %v160
    %274 = vmatpush.msra.mxu0 %v159
    %275 = vmatpush.msra.mxu0 %v158
    %276 = vmatpush.msra.mxu0 %v157
    %277 = vmatpush.msra.mxu0 %v156
    %278 = vmatpush.msra.mxu0 %v155
    %279 = vmatpush.msra.mxu0 %v154
    %280 = vmatpush.msra.mxu0 %v153
    %281 = vmatpush.msra.mxu0 %v152
    %282 = vmatpush.msra.mxu0 %v151
    %283 = vmatpush.msra.mxu0 %v150
    %284 = vmatmul.f32.gmra.mxu0 %v83
    %v285 = vpop.f32.mrf.mxu0
    %v286 = vadd.f32 %v266, %v285
    %287 = vdwg.mxu0
    %288 = vmatpush.msra.mxu0 %v181
    %289 = vmatpush.msra.mxu0 %v180
    %290 = vmatpush.msra.mxu0 %v179
    %291 = vmatpush.msra.mxu0 %v178
    %292 = vmatpush.msra.mxu0 %v177
    %293 = vmatpush.msra.mxu0 %v176
    %294 = vmatpush.msra.mxu0 %v175
    %295 = vmatpush.msra.mxu0 %v174
    %296 = vmatpush.msra.mxu0 %v173
    %297 = vmatpush.msra.mxu0 %v172
    %298 = vmatpush.msra.mxu0 %v171
    %299 = vmatpush.msra.mxu0 %v170
    %300 = vmatpush.msra.mxu0 %v169
    %301 = vmatpush.msra.mxu0 %v168
    %302 = vmatpush.msra.mxu0 %v167
    %303 = vmatpush.msra.mxu0 %v166
    %304 = vmatmul.f32.gmra.mxu0 %v84
    %v305 = vpop.f32.mrf.mxu0
    %v306 = vadd.f32 %v286, %v305
    %307 = vdwg.mxu0
    %308 = vmatpush.msra.mxu0 0.0
    %309 = vmatpush.msra.mxu0 0.0
    %310 = vmatpush.msra.mxu0 0.0
    %311 = vmatpush.msra.mxu0 0.0
    %312 = vmatpush.msra.mxu0 0.0
    %313 = vmatpush.msra.mxu0 0.0
    %314 = vmatpush.msra.mxu0 0.0
    %315 = vmatpush.msra.mxu0 0.0
    %316 = vmatpush.msra.mxu0 0.0
    %317 = vmatpush.msra.mxu0 0.0
    %318 = vmatpush.msra.mxu0 0.0
    %319 = vmatpush.msra.mxu0 0.0
    %320 = vmatpush.msra.mxu0 0.0
    %321 = vmatpush.msra.mxu0 0.0
    %322 = vmatpush.msra.mxu0 %v183
    %323 = vmatpush.msra.mxu0 %v182
    %324 = vmatmul.f32.gmra.mxu0 %v186
    %v325 = vpop.f32.mrf.mxu0
    %v326 = vadd.f32 %v306, %v325
    %327 = vdwg.mxu0
    %v328 = vmax.f32 %v326, 0.0
    %v329 = vld [vmem:[#allocation7] sm:$0xff]
    %v330 = vld [vmem:[#allocation7 + $0x8] sm:$0xff]
    %v331 = vld [vmem:[#allocation7 + $0x10] sm:$0xff]
    %v332 = vld [vmem:[#allocation7 + $0x18] sm:$0xff]
    %v333 = vld [vmem:[#allocation7 + $0x20] sm:$0xff]
    %v334 = vld [vmem:[#allocation7 + $0x28] sm:$0xff]
    %v335 = vld [vmem:[#allocation7 + $0x30] sm:$0xff]
    %v336 = vld [vmem:[#allocation7 + $0x38] sm:$0xff]
    %v337 = vld [vmem:[#allocation7 + $0x40] sm:$0xff]
    %v338 = vld [vmem:[#allocation7 + $0x48] sm:$0xff]
    %v339 = vld [vmem:[#allocation7 + $0x50] sm:$0xff]
    %v340 = vld [vmem:[#allocation7 + $0x58] sm:$0xff]
    %v341 = vld [vmem:[#allocation7 + $0x60] sm:$0xff]
    %v342 = vld [vmem:[#allocation7 + $0x68] sm:$0xff]
    %v343 = vld [vmem:[#allocation7 + $0x70] sm:$0xff]
    %v344 = vld [vmem:[#allocation7 + $0x78] sm:$0xff]
    %345 = vmatpush.msra.mxu0 %v344
    %346 = vmatpush.msra.mxu0 %v343
    %347 = vmatpush.msra.mxu0 %v342
    %348 = vmatpush.msra.mxu0 %v341
    %349 = vmatpush.msra.mxu0 %v340
    %350 = vmatpush.msra.mxu0 %v339
    %351 = vmatpush.msra.mxu0 %v338
    %352 = vmatpush.msra.mxu0 %v337
    %353 = vmatpush.msra.mxu0 %v336
    %354 = vmatpush.msra.mxu0 %v335
    %355 = vmatpush.msra.mxu0 %v334
    %356 = vmatpush.msra.mxu0 %v333
    %357 = vmatpush.msra.mxu0 %v332
    %358 = vmatpush.msra.mxu0 %v331
    %359 = vmatpush.msra.mxu0 %v330
    %360 = vmatpush.msra.mxu0 %v329
    %361 = vmatmul.f32.gmra.mxu0 %v328
    %v362 = vpop.f32.mrf.mxu0
    %v363 = vadd.f32 0.0, %v362
    %364 = vdwg.mxu0
    %v365 = vmax.f32 %v363, 0.0
    %v366 = vld [vmem:[#allocation8] sm:$0xff]
    %v367 = vld [vmem:[#allocation8 + $0x8] sm:$0xff]
    %v368 = vld [vmem:[#allocation8 + $0x10] sm:$0xff]
    %v369 = vld [vmem:[#allocation8 + $0x18] sm:$0xff]
    %v370 = vld [vmem:[#allocation8 + $0x20] sm:$0xff]
    %v371 = vld [vmem:[#allocation8 + $0x28] sm:$0xff]
    %v372 = vld [vmem:[#allocation8 + $0x30] sm:$0xff]
    %v373 = vld [vmem:[#allocation8 + $0x38] sm:$0xff]
    %v374 = vld [vmem:[#allocation8 + $0x40] sm:$0xff]
    %v375 = vld [vmem:[#allocation8 + $0x48] sm:$0xff]
    %v376 = vld [vmem:[#allocation8 + $0x50] sm:$0xff]
    %v377 = vld [vmem:[#allocation8 + $0x58] sm:$0xff]
    %v378 = vld [vmem:[#allocation8 + $0x60] sm:$0xff]
    %v379 = vld [vmem:[#allocation8 + $0x68] sm:$0xff]
    %v380 = vld [vmem:[#allocation8 + $0x70] sm:$0xff]
    %v381 = vld [vmem:[#allocation8 + $0x78] sm:$0xff]
    %382 = vmatpush.msra.mxu0 %v381
    %383 = vmatpush.msra.mxu0 %v380
    %384 = vmatpush.msra.mxu0 %v379
    %385 = vmatpush.msra.mxu0 %v378
    %386 = vmatpush.msra.mxu0 %v377
    %387 = vmatpush.msra.mxu0 %v376
    %388 = vmatpush.msra.mxu0 %v375
    %389 = vmatpush.msra.mxu0 %v374
    %390 = vmatpush.msra.mxu0 %v373
    %391 = vmatpush.msra.mxu0 %v372
    %392 = vmatpush.msra.mxu0 %v371
    %393 = vmatpush.msra.mxu0 %v370
    %394 = vmatpush.msra.mxu0 %v369
    %395 = vmatpush.msra.mxu0 %v368
    %396 = vmatpush.msra.mxu0 %v367
    %397 = vmatpush.msra.mxu0 %v366
    %398 = vmatmul.f32.gmra.mxu0 %v365
    %v399 = vpop.f32.mrf.mxu0
    %v400 = vadd.f32 0.0, %v399
    %401 = vdwg.mxu0
    %402 = vst [vmem:[#allocation10] sm:$0xff] %v400
    // Predicated region
    $region34: #{mlp_forward.1} parent=1 // pred_check
      _
    $region35: #{mlp_forward.1} parent=1 // pred_check_branch
      %404 = sbr.rel (0) target = $region37
    $region36: #{mlp_forward.1} parent=1 // pred_region
      %406 = vsyncadd [#allocation4], 0
      %s408 = sshll.u32 [#allocation10], 4
      %s409 = int_to_ptr.vmem [resolvable:$true] %s408
      %s410 = sshll.u32 %s4, 4
      %s411 = int_to_ptr.hbm [resolvable:$true] %s410
      %413 = dma.vmem_to_hbm [thread:$0]  %s409, 128, %s411, [#allocation4]
    $region37: #{mlp_forward.1} parent=1 // pred_fallthru
      _
    // Predicated region
    $region38: #{mlp_forward.1} parent=1 // pred_check
      _
    $region39: #{mlp_forward.1} parent=1 // pred_check_branch
      %415 = sbr.rel (0) target = $region41
    $region40: #{mlp_forward.1} parent=1 // pred_region
      %417 = dma.done [#allocation4], 128
    $region41: #{mlp_forward.1} parent=1 // pred_fallthru
      _
    %418 = vsyncpa [#allocation3], 1
    %419 = vsyncpa [#allocation6], 1
    %420 = vsyncpa [#allocation9], 1
    %421 = vsyncpa [#allocation4], 1

</llo_original>
